<compile_context>
chip_gen: v6e
topology: v6e:2x2x1
jax: 0.10.0
libtpu: 0.0.40
codegen_flags: <defaults>
</compile_context>

<pallas_src>
import functools

import jax
import jax.numpy as jnp
from jax.experimental import pallas as pl
from jax.experimental.pallas import tpu as pltpu


def _round_up(x, m):
    return ((x + m - 1) // m) * m


def _fc_softmax_kernel(x_ref, w_ref, o_ref, acc_ref, *, out_size):
    # x_ref: (TB, TK)   w_ref: (TK, N_pad)   o_ref / acc_ref: (TB, N_pad)
    k = pl.program_id(1)

    @pl.when(k == 0)
    def _init():
        acc_ref[...] = jnp.zeros_like(acc_ref)

    # Linear (no bias): accumulate x @ W_t on the MXU in f32.
    acc_ref[...] += jnp.dot(
        x_ref[...], w_ref[...], preferred_element_type=jnp.float32
    )

    @pl.when(k == pl.num_programs(1) - 1)
    def _finalize():
        logits = acc_ref[...]
        n_pad = logits.shape[-1]
        if n_pad != out_size:
            # Mask the lane-padding columns so they don't enter the softmax.
            col = jax.lax.broadcasted_iota(jnp.int32, logits.shape, 1)
            logits = jnp.where(col < out_size, logits, -jnp.inf)
        m = jnp.max(logits, axis=1, keepdims=True)
        e = jnp.exp(logits - m)
        denom = jnp.sum(e, axis=1, keepdims=True)
        o_ref[...] = (e * pl.reciprocal(denom, approx=True)).astype(o_ref.dtype)


@jax.jit
def fc_forward(x, weight):
    """x: (B, in_size); weight: (out_size, in_size). Returns softmax(x @ W^T, axis=1)."""
    B, in_size = x.shape
    out_size, in_size_w = weight.shape
    assert in_size == in_size_w

    # Layout plumbing in the wrapper: present the RHS as (K, N).
    w_t = weight.T  # (in_size, out_size)

    # Padding / tile sizes: lane dims to multiples of 128, batch tile multiple of 8.
    n_pad = _round_up(out_size, 128)
    k_pad = _round_up(in_size, 128)
    if k_pad % 512 == 0:
        tk = 512
    elif k_pad % 256 == 0:
        tk = 256
    else:
        tk = 128
    tb = min(256, _round_up(B, 8))
    b_pad = _round_up(B, tb)

    x_p = jnp.pad(x, ((0, b_pad - B), (0, k_pad - in_size)))
    w_p = jnp.pad(w_t, ((0, k_pad - in_size), (0, n_pad - out_size)))

    grid = (b_pad // tb, k_pad // tk)

    out = pl.pallas_call(
        functools.partial(_fc_softmax_kernel, out_size=out_size),
        out_shape=jax.ShapeDtypeStruct((b_pad, n_pad), x.dtype),
        grid_spec=pltpu.PrefetchScalarGridSpec(
            num_scalar_prefetch=0,
            grid=grid,
            in_specs=[
                # x tile moves with (batch, k); weight tile moves only with k
                # so it stays VMEM-resident across the whole batch loop.
                pl.BlockSpec((tb, tk), lambda i, k: (i, k)),
                pl.BlockSpec((tk, n_pad), lambda i, k: (k, 0)),
            ],
            # Output tile is invariant along the K axis (accumulator semantics).
            out_specs=pl.BlockSpec((tb, n_pad), lambda i, k: (i, 0)),
            scratch_shapes=[pltpu.VMEM((tb, n_pad), jnp.float32)],
        ),
        compiler_params=pltpu.CompilerParams(
            dimension_semantics=("parallel", "arbitrary"),
        ),
    )(x_p, w_p)

    return out[:B, :out_size]


if __name__ == "__main__":
    key = jax.random.PRNGKey(0)

    def run_case(B, in_size, out_size, case_key):
        kx, kw = jax.random.split(case_key)
        x = jax.random.normal(kx, (B, in_size), dtype=jnp.float32)
        # Deterministic "Kaiming-uniform-like" init for nn.Linear weight (out, in).
        bound = 1.0 / jnp.sqrt(jnp.float32(in_size))
        weight = jax.random.uniform(
            kw, (out_size, in_size), dtype=jnp.float32, minval=-bound, maxval=bound
        )
        out = fc_forward(x, weight)
        jax.block_until_ready(out)
        ref = jax.nn.softmax(x @ weight.T, axis=1)
        assert out.shape == (B, out_size)
        # approx-reciprocal softmax -> slightly looser tolerance than exact path.
        assert jnp.allclose(out, ref, atol=2e-3, rtol=2e-3), (
            f"mismatch vs reference for shapes B={B}, in={in_size}, out={out_size}"
        )

    k1, k2 = jax.random.split(key)
    # Small shapes consistent with the module: FC(in_size=32, out_size=16), batch=8.
    run_case(8, 32, 16, k1)
    # A second case exercising batch tiling + lane padding/masking paths.
    run_case(300, 160, 20, k2)

    print("KERNEL_OK")
</pallas_src>

<mosaic_0001>
module attributes {stable_mosaic.version = 11 : i64} {
  func.func @_fc_softmax_kernel(%arg0: i32, %arg1: i32, %arg2: memref<8x128xf32, #tpu.memory_space<vmem>>, %arg3: memref<128x128xf32, #tpu.memory_space<vmem>>, %arg4: memref<8x128xf32, #tpu.memory_space<vmem>>, %arg5: memref<8x128xf32, #tpu.memory_space<vmem>>) attributes {dimension_semantics = [#tpu.dimension_semantics<parallel>, #tpu.dimension_semantics<arbitrary>], iteration_bounds = array<i64: 1, 1>, scalar_prefetch = 0 : i64, scratch_operands = 1 : i64, tpu.core_type = #tpu.core_type<tc>, window_params = [{transform_indices = @transform_0, window_bounds = array<i64: 8, 128>}, {transform_indices = @transform_1, window_bounds = array<i64: 128, 128>}, {transform_indices = @transform_2, window_bounds = array<i64: 8, 128>}]} {
    %c0_i32 = arith.constant 0 : i32
    %0 = arith.cmpi eq, %arg1, %c0_i32 : i32
    %1 = arith.extui %0 : i1 to i32
    %c0_i32_0 = arith.constant 0 : i32
    %2 = arith.cmpi ne, %1, %c0_i32_0 : i32
    scf.if %2 {
      %cst_10 = arith.constant 0.000000e+00 : f32
      %12 = vector.broadcast %cst_10 : f32 to vector<8x128xf32>
      %c0_11 = arith.constant 0 : index
      %c0_12 = arith.constant 0 : index
      %13 = vector.load %arg5[%c0_11, %c0_12] : memref<8x128xf32, #tpu.memory_space<vmem>>, vector<8x128xf32>
      tpu.vector_store %arg5[%c0_11, %c0_12], %12 {strides = array<i32>} : memref<8x128xf32, #tpu.memory_space<vmem>>, vector<8x128xf32>,
    } else {
    }
    %c0 = arith.constant 0 : index
    %c0_1 = arith.constant 0 : index
    %3 = vector.load %arg5[%c0, %c0_1] : memref<8x128xf32, #tpu.memory_space<vmem>>, vector<8x128xf32>
    %c0_2 = arith.constant 0 : index
    %c0_3 = arith.constant 0 : index
    %4 = vector.load %arg2[%c0_2, %c0_3] : memref<8x128xf32, #tpu.memory_space<vmem>>, vector<8x128xf32>
    %c0_4 = arith.constant 0 : index
    %c0_5 = arith.constant 0 : index
    %5 = vector.load %arg3[%c0_4, %c0_5] : memref<128x128xf32, #tpu.memory_space<vmem>>, vector<128x128xf32>
    %cst = arith.constant dense<0.000000e+00> : vector<8x128xf32>
    %6 = tpu.matmul %4, %5, %cst {dimension_numbers = #tpu.dot_dimension_numbers<[1], [0], [0], [1], [0, 0, 1, 1], [], []>} : vector<8x128xf32>, vector<128x128xf32>, vector<8x128xf32> -> vector<8x128xf32>
    %7 = arith.addf %3, %6 : vector<8x128xf32>
    %c0_6 = arith.constant 0 : index
    %c0_7 = arith.constant 0 : index
    %8 = vector.load %arg5[%c0_6, %c0_7] : memref<8x128xf32, #tpu.memory_space<vmem>>, vector<8x128xf32>
    tpu.vector_store %arg5[%c0_6, %c0_7], %7 {strides = array<i32>} : memref<8x128xf32, #tpu.memory_space<vmem>>, vector<8x128xf32>,
    %c0_i32_8 = arith.constant 0 : i32
    %9 = arith.cmpi eq, %arg1, %c0_i32_8 : i32
    %10 = arith.extui %9 : i1 to i32
    %c0_i32_9 = arith.constant 0 : i32
    %11 = arith.cmpi ne, %10, %c0_i32_9 : i32
    scf.if %11 {
      %c0_10 = arith.constant 0 : index
      %c0_11 = arith.constant 0 : index
      %12 = vector.load %arg5[%c0_10, %c0_11] : memref<8x128xf32, #tpu.memory_space<vmem>>, vector<8x128xf32>
      %13 = tpu.iota {dimensions = array<i32: 1>} : vector<8x128xi32>
      %c16_i32 = arith.constant 16 : i32
      %14 = vector.broadcast %c16_i32 : i32 to vector<8x128xi32>
      %15 = arith.cmpi slt, %13, %14 : vector<8x128xi32>
      %cst_12 = arith.constant 0xFF800000 : f32
      %16 = vector.broadcast %cst_12 : f32 to vector<8x128xf32>
      %17 = arith.select %15, %12, %16 : vector<8x128xi1>, vector<8x128xf32>
      %cst_13 = arith.constant dense<0xFF800000> : vector<8xf32>
      %18 = vector.multi_reduction <maximumf>, %17, %cst_13 [1] : vector<8x128xf32> to vector<8xf32>
      %19 = vector.shape_cast %18 : vector<8xf32> to vector<8x1xf32>
      %20 = vector.broadcast %19 : vector<8x1xf32> to vector<8x128xf32>
      %21 = arith.subf %17, %20 : vector<8x128xf32>
      %22 = math.exp %21 : vector<8x128xf32>
      %cst_14 = arith.constant dense<0.000000e+00> : vector<8xf32>
      %23 = vector.multi_reduction <add>, %22, %cst_14 [1] : vector<8x128xf32> to vector<8xf32>
      %24 = vector.shape_cast %23 : vector<8xf32> to vector<8x1xf32>
      %25 = tpu.reciprocal %24 {approx = true} : vector<8x1xf32> -> vector<8x1xf32>
      %26 = vector.broadcast %25 : vector<8x1xf32> to vector<8x128xf32>
      %27 = arith.mulf %22, %26 : vector<8x128xf32>
      %c0_15 = arith.constant 0 : index
      %c0_16 = arith.constant 0 : index
      %28 = vector.load %arg4[%c0_15, %c0_16] : memref<8x128xf32, #tpu.memory_space<vmem>>, vector<8x128xf32>
      tpu.vector_store %arg4[%c0_15, %c0_16], %27 {strides = array<i32>} : memref<8x128xf32, #tpu.memory_space<vmem>>, vector<8x128xf32>,
    } else {
    }
    return
  }
  func.func @transform_0(%arg0: i32, %arg1: i32) -> (i32, i32) {
    %c0_i32 = arith.constant 0 : i32
    return %arg0, %arg1 : i32, i32
  }
  func.func @transform_1(%arg0: i32, %arg1: i32) -> (i32, i32) {
    %c0_i32 = arith.constant 0 : i32
    %c0_i32_0 = arith.constant 0 : i32
    return %arg1, %c0_i32 : i32, i32
  }
  func.func @transform_2(%arg0: i32, %arg1: i32) -> (i32, i32) {
    %c0_i32 = arith.constant 0 : i32
    %c0_i32_0 = arith.constant 0 : i32
    return %arg0, %c0_i32 : i32, i32
  }
}

</mosaic_0001>

<llo_original>
// kernel: fc_forward.1
$region0: #{fc_forward.1}
  #allocation0 [shape = 'u32[]', space=smem, size = 0x4, offset = 0x4, fixed_abs, tag = 'smem constant byte address 0x4 - core index']
  #allocation1 [shape = 'u32[144,128]{1,0:T(1,128)}', space=vmem, size = 0x12000, scoped, tag = 'internal scratch']
  #allocation2 [shape = 'f32[8,128]{1,0:T(8,128)}', space=vmem, size = 0x1000, scoped, tag = 'scratch operand']
  %s0 = inlined_call_operand.vmem [shape: f32[8,128], index: 0, kind: input, shape index: {}]
  %s1 = inlined_call_operand.vmem [shape: f32[128,128], index: 1, kind: input, shape index: {}]
  %s2 = inlined_call_operand.hbm [shape: f32[8,128], index: 2, kind: output, shape index: {}]
  %s3 = sld [smem:[#allocation0]]
  $region26: #{fc_forward.1} parent=0
    _
  %s5 = ssub.s32 1, %s3
  %s6 = scalar_select 0, %s5, %s3
  $region1: #{fc_forward.1} parent=0
    #allocation3 [shape = 'u8[4096]{0}', space=vmem, size = 0x1000, scoped, tag = 'output window, operand 0, single buffered']
    #allocation4 [shape = 's32[1]{0}', space=sflag, size = 0x4, scoped, tag = 'scoped memory for fc_forward.1']
    %7 = vsyncpa [#allocation4], 0
    // Predicated region
    $region2: #{fc_forward.1} parent=1 // pred_check
      _
    $region3: #{fc_forward.1} parent=1 // pred_check_branch
      %9 = sbr.rel (0) target = $region5
    $region4: #{fc_forward.1} parent=1 // pred_region
      _
    $region5: #{fc_forward.1} parent=1 // pred_fallthru
      _
    // Predicated region
    $region6: #{fc_forward.1} parent=1 // pred_check
      _
    $region7: #{fc_forward.1} parent=1 // pred_check_branch
      %11 = sbr.rel (0) target = $region9
    $region8: #{fc_forward.1} parent=1 // pred_region
      _
    $region9: #{fc_forward.1} parent=1 // pred_fallthru
      _
    %p12 = scmp.eq.s32.totalorder 0, 0
    // Predicated region
    $region10: #{fc_forward.1} parent=1 // pred_check
      %p13 = pneg %p12
    $region11: #{fc_forward.1} parent=1 // pred_check_branch
      %15 = sbr.rel (%p13) target = $region13
    $region12: #{fc_forward.1} parent=1 // pred_region
      %16 = vst [vmem:[#allocation2] sm:$0xff] 0.0
    $region13: #{fc_forward.1} parent=1 // pred_fallthru
      _
    %v17 = vld [vmem:[#allocation2] sm:$0xff]
    %v18 = vld [vmem:[%s0] sm:$0xff]
    %v19 = vld [vmem:[%s1] sm:$0xff]
    %v20 = vld [vmem:[%s1 + $0x8] sm:$0xff]
    %v21 = vld [vmem:[%s1 + $0x10] sm:$0xff]
    %v22 = vld [vmem:[%s1 + $0x18] sm:$0xff]
    %v23 = vld [vmem:[%s1 + $0x20] sm:$0xff]
    %v24 = vld [vmem:[%s1 + $0x28] sm:$0xff]
    %v25 = vld [vmem:[%s1 + $0x30] sm:$0xff]
    %v26 = vld [vmem:[%s1 + $0x38] sm:$0xff]
    %v27 = vld [vmem:[%s1 + $0x40] sm:$0xff]
    %v28 = vld [vmem:[%s1 + $0x48] sm:$0xff]
    %v29 = vld [vmem:[%s1 + $0x50] sm:$0xff]
    %v30 = vld [vmem:[%s1 + $0x58] sm:$0xff]
    %v31 = vld [vmem:[%s1 + $0x60] sm:$0xff]
    %v32 = vld [vmem:[%s1 + $0x68] sm:$0xff]
    %v33 = vld [vmem:[%s1 + $0x70] sm:$0xff]
    %v34 = vld [vmem:[%s1 + $0x78] sm:$0xff]
    %35 = vmatprep.subr.mxu0 0.0
    %36 = vmatpush1.msra.mxu0 %v34
    %37 = vmatprep.subr.mxu0 0.0
    %38 = vmatpush1.msra.mxu0 %v33
    %39 = vmatprep.subr.mxu0 0.0
    %40 = vmatpush1.msra.mxu0 %v32
    %41 = vmatprep.subr.mxu0 0.0
    %42 = vmatpush1.msra.mxu0 %v31
    %43 = vmatprep.subr.mxu0 0.0
    %44 = vmatpush1.msra.mxu0 %v30
    %45 = vmatprep.subr.mxu0 0.0
    %46 = vmatpush1.msra.mxu0 %v29
    %47 = vmatprep.subr.mxu0 0.0
    %48 = vmatpush1.msra.mxu0 %v28
    %49 = vmatprep.subr.mxu0 0.0
    %50 = vmatpush1.msra.mxu0 %v27
    %51 = vmatprep.subr.mxu0 0.0
    %52 = vmatpush1.msra.mxu0 %v26
    %53 = vmatprep.subr.mxu0 0.0
    %54 = vmatpush1.msra.mxu0 %v25
    %55 = vmatprep.subr.mxu0 0.0
    %56 = vmatpush1.msra.mxu0 %v24
    %57 = vmatprep.subr.mxu0 0.0
    %58 = vmatpush1.msra.mxu0 %v23
    %59 = vmatprep.subr.mxu0 0.0
    %60 = vmatpush1.msra.mxu0 %v22
    %61 = vmatprep.subr.mxu0 0.0
    %62 = vmatpush1.msra.mxu0 %v21
    %63 = vmatprep.subr.mxu0 0.0
    %64 = vmatpush1.msra.mxu0 %v20
    %65 = vmatprep.subr.mxu0 0.0
    %66 = vmatpush1.msra.mxu0 %v19
    %67 = vmatprep.subr.mxu0 0.0
    %68 = vmatpush2.msra.mxu0 0.0
    %69 = vmatprep.subr.mxu0 0.0
    %70 = vmatpush2.msra.mxu0 0.0
    %71 = vmatprep.subr.mxu0 0.0
    %72 = vmatpush2.msra.mxu0 0.0
    %73 = vmatprep.subr.mxu0 0.0
    %74 = vmatpush2.msra.mxu0 0.0
    %75 = vmatprep.subr.mxu0 0.0
    %76 = vmatpush2.msra.mxu0 0.0
    %77 = vmatprep.subr.mxu0 0.0
    %78 = vmatpush2.msra.mxu0 0.0
    %79 = vmatprep.subr.mxu0 0.0
    %80 = vmatpush2.msra.mxu0 0.0
    %81 = vmatprep.subr.mxu0 0.0
    %82 = vmatpush2.msra.mxu0 0.0
    %83 = vmatprep.subr.mxu0 0.0
    %84 = vmatpush2.msra.mxu0 0.0
    %85 = vmatprep.subr.mxu0 0.0
    %86 = vmatpush2.msra.mxu0 0.0
    %87 = vmatprep.subr.mxu0 0.0
    %88 = vmatpush2.msra.mxu0 0.0
    %89 = vmatprep.subr.mxu0 0.0
    %90 = vmatpush2.msra.mxu0 0.0
    %91 = vmatprep.subr.mxu0 0.0
    %92 = vmatpush2.msra.mxu0 0.0
    %93 = vmatprep.subr.mxu0 0.0
    %94 = vmatpush2.msra.mxu0 0.0
    %95 = vmatprep.subr.mxu0 0.0
    %96 = vmatpush2.msra.mxu0 0.0
    %97 = vmatprep.subr.mxu0 0.0
    %98 = vmatpush2.msra.mxu0 0.0
    %99 = vmatprep.mubr.f32.mxu0 0.0
    %100 = vmatmul.mubr.f32.gmra.mxu0 %v18
    %v101 = vpop.f32.mrf.mxu0
    %v102 = vadd.f32 0.0, %v101
    %v103 = vpop.f32.mrf.mxu0
    %104 = vdwg.mxu0
    %v105 = vadd.f32 %v17, %v102
    %106 = vst [vmem:[#allocation2] sm:$0xff] %v105
    // Predicated region
    $region14: #{fc_forward.1} parent=1 // pred_check
      %p107 = pneg %p12
    $region15: #{fc_forward.1} parent=1 // pred_check_branch
      %109 = sbr.rel (%p107) target = $region17
    $region16: #{fc_forward.1} parent=1 // pred_region
      %v110 = vld [vmem:[#allocation2] sm:$0xff]
      %v111 = vlaneseq
      %v112 = vand.u32 %v111, 127
      %vm113 = vcmp.lt.s32.totalorder %v112, 16
      %v114 = vsel %vm113, %v110, -inf
      %115 = vmax.xlane.f32.xlu0 %v114
      %v116 = vpop.xlane.xlu0 %115
      %v117 = vsub.f32 %v114, %v116
      %v118 = vmul.f32 %v117, 1.442695
      %v119 = vpow.pop %v118
      %120 = vadd.xlane.f32.xlu0 %v119
      %v121 = vpop.xlane.xlu0 %120
      %v122 = vrcp.pop %v121
      %v123 = vmul.f32 %v119, %v122
      %124 = vst [vmem:[#allocation3] sm:$0xff] %v123
    $region17: #{fc_forward.1} parent=1 // pred_fallthru
      _
    // Predicated region
    $region18: #{fc_forward.1} parent=1 // pred_check
      _
    $region19: #{fc_forward.1} parent=1 // pred_check_branch
      %126 = sbr.rel (0) target = $region21
    $region20: #{fc_forward.1} parent=1 // pred_region
      %s128 = ssub.s32 128, 128
      %129 = vsyncadd [#allocation4], %s128
      %s131 = sshll.u32 [#allocation3], 4
      %s132 = int_to_ptr.vmem [resolvable:$true] %s131
      %134 = dma.vmem_to_hbm [thread:$0]  %s132, 128, %s2, [#allocation4]
    $region21: #{fc_forward.1} parent=1 // pred_fallthru
      _
    // Predicated region
    $region22: #{fc_forward.1} parent=1 // pred_check
      _
    $region23: #{fc_forward.1} parent=1 // pred_check_branch
      %136 = sbr.rel (0) target = $region25
    $region24: #{fc_forward.1} parent=1 // pred_region
      %137 = dma.done [#allocation4], 128
    $region25: #{fc_forward.1} parent=1 // pred_fallthru
      _
    %138 = vsyncpa [#allocation4], 1

</llo_original>
